<compile_context>
chip_gen: v7x
topology: tpu7x:2x2x1
jax: 0.10.0
libtpu: 0.0.40
codegen_flags: <defaults>
</compile_context>

<pallas_src>
import functools

import jax
import jax.numpy as jnp
from jax import lax
from jax.experimental import pallas as pl
from jax.experimental.pallas import tpu as pltpu


def _round_up(x, m):
    return ((x + m - 1) // m) * m


def _cdiv(a, b):
    return (a + b - 1) // b


def _vmem_capacity_bytes():
    """Physical per-core VMEM (bytes); conservative fallback if query fails."""
    try:
        info = pltpu.get_tpu_info()
        cap = getattr(info, "vmem_capacity_bytes", None)
        if cap:
            return int(cap)
    except Exception:
        pass
    return 64 << 20  # v7x-sized fallback: safe on every generation


# ---------------------------------------------------------------------------
# Kernels
# ---------------------------------------------------------------------------

def _lm_head_kernel_single_k(x_ref, w_ref, o_ref):
    """Single-K fast path: one MXU dot per (i, j) tile, no accumulation branches."""
    o_ref[...] = lax.dot_general(
        x_ref[...],
        w_ref[...],
        dimension_numbers=(((1,), (1,)), ((), ())),  # x @ w.T, K minor on both operands
        preferred_element_type=jnp.float32,
    )


def _lm_head_kernel_kgrid_streamed(x_ref, w_ref, o_ref):
    """x block (tm, tk) streamed per (i, k); f32 output block is the resident accumulator."""
    k = pl.program_id(2)
    p = lax.dot_general(
        x_ref[...],
        w_ref[...],
        dimension_numbers=(((1,), (1,)), ((), ())),
        preferred_element_type=jnp.float32,
    )

    @pl.when(k == 0)
    def _store_first():
        o_ref[...] = p            # direct store: no zero-init + RMW on the first K step

    @pl.when(k != 0)
    def _accumulate():
        o_ref[...] += p


def _make_kresident_kernel(tk_eff):
    """x block (tm, D) resident across the vocab / K axes; sliced per K step."""

    def kernel(x_ref, w_ref, o_ref):
        k = pl.program_id(2)
        start = pl.multiple_of(k * tk_eff, 128)
        xk = x_ref[:, pl.ds(start, tk_eff)]
        p = lax.dot_general(
            xk,
            w_ref[...],
            dimension_numbers=(((1,), (1,)), ((), ())),
            preferred_element_type=jnp.float32,
        )

        @pl.when(k == 0)
        def _store_first():
            o_ref[...] = p

        @pl.when(k != 0)
        def _accumulate():
            o_ref[...] += p

    return kernel


# ---------------------------------------------------------------------------
# Wrapper
# ---------------------------------------------------------------------------

@functools.partial(jax.jit, static_argnames=("tm", "tn", "tk"))
def output_layer_forward(data, weight, *, tm=1024, tn=2048, tk=1024):
    """data: (B, S, D)  weight: (V, D)  ->  (B, S, V) float32  (== lm_head(data).float())."""
    B, S, D = data.shape
    V, D2 = weight.shape
    assert D == D2
    assert jnp.issubdtype(data.dtype, jnp.floating)
    # TODO(synk): int8/fp8 weights would need 32-row tile alignment (and v7x has
    # no int MXU path); only floating-point weights are supported here.
    assert jnp.issubdtype(weight.dtype, jnp.floating)

    M = B * S
    x = data.reshape(M, D)
    w = weight

    # --- VMEM budget (generation-aware) -------------------------------------
    vmem_cap = _vmem_capacity_bytes()
    # ~48 MiB on v7x (64 MiB physical), ~96 MiB on v5e/v6e (128 MiB physical).
    vmem_budget = min((3 * vmem_cap) // 4, 100 << 20)
    fit_budget = vmem_budget - (6 << 20)  # headroom for Mosaic internal scratch

    # --- Tile alignment / clamping ------------------------------------------
    tm = max(16, _round_up(tm, 16))
    tn = max(128, _round_up(tn, 128))
    tk = max(128, _round_up(tk, 128))

    tm_eff = min(tm, _round_up(M, 16))
    tn_eff = min(tn, _round_up(V, 128))

    # --- K (reduction) dim: pick tk_eff; zero-pad K only if unavoidable ------
    kdim = D
    if D <= tk:
        # Full-K single step; block last dim equals the full array dim, so no
        # 128-alignment or padding is needed.
        tk_eff = D
        num_k = 1
    else:
        if D % 128 == 0:
            # Largest multiple of 128 that is <= tk and divides D exactly
            # (128 always works), so no K padding and no ragged K block.
            tk_eff = tk
            while D % tk_eff != 0:
                tk_eff -= 128
            num_k = D // tk_eff
        else:
            # Rare path: D > tk and not 128-aligned.  Zero-pad K on both
            # operands (mathematically exact); everything else stays unpadded.
            k_pad = _round_up(D, 128)
            tk_eff = tk
            while k_pad % tk_eff != 0:
                tk_eff -= 128
            x = jnp.pad(x, ((0, 0), (0, k_pad - D)))
            w = jnp.pad(w, ((0, 0), (0, k_pad - D)))
            kdim = k_pad
            num_k = k_pad // tk_eff

    x_itemsize = jnp.dtype(x.dtype).itemsize
    w_itemsize = jnp.dtype(w.dtype).itemsize

    # --- Fit tiles (and x residency) into the VMEM budget --------------------
    x_resident = num_k > 1  # prefer K-resident activations when there is a K grid

    def _footprint(tm_, tn_, resident_):
        x_cols = kdim if (resident_ or num_k == 1) else tk_eff
        return (2 * tm_ * x_cols * x_itemsize          # double-buffered x
                + 2 * tn_ * tk_eff * w_itemsize        # double-buffered weight
                + 2 * tm_ * tn_ * 4)                   # double-buffered f32 out

    while _footprint(tm_eff, tn_eff, x_resident) > fit_budget:
        if x_resident:
            x_resident = False                          # cheapest thing to give up
        elif tm_eff >= tn_eff and tm_eff > 128:
            tm_eff = max(_round_up(tm_eff // 2, 16), 128)
        elif tn_eff > 128:
            tn_eff = max(_round_up(tn_eff // 2, 128), 128)
        elif tm_eff > 16:
            tm_eff = max(_round_up(tm_eff // 2, 16), 16)
        else:
            break

    num_m = _cdiv(M, tm_eff)
    num_n = _cdiv(V, tn_eff)

    # Decode-shaped calls: single M tile -> lead with the vocab axis so the
    # megacore split (v7x) shards a parallel axis with extent > 1.
    swap_mn = (num_m == 1 and num_n > 1)

    # --- Grid / specs ---------------------------------------------------------
    if num_k == 1:
        kernel = _lm_head_kernel_single_k
        x_block = (tm_eff, kdim)
        w_block = (tn_eff, kdim)
        if swap_mn:
            grid = (num_n, num_m)
            x_map = lambda j, i: (i, 0)
            w_map = lambda j, i: (j, 0)
            o_map = lambda j, i: (i, j)
        else:
            grid = (num_m, num_n)
            x_map = lambda i, j: (i, 0)
            w_map = lambda i, j: (j, 0)
            o_map = lambda i, j: (i, j)
        dim_sem = ("parallel", "parallel")
    else:
        w_block = (tn_eff, tk_eff)
        if x_resident:
            kernel = _make_kresident_kernel(tk_eff)
            x_block = (tm_eff, kdim)
            x_map = (lambda j, i, k: (i, 0)) if swap_mn else (lambda i, j, k: (i, 0))
        else:
            kernel = _lm_head_kernel_kgrid_streamed
            x_block = (tm_eff, tk_eff)
            x_map = (lambda j, i, k: (i, k)) if swap_mn else (lambda i, j, k: (i, k))
        if swap_mn:
            grid = (num_n, num_m, num_k)
            w_map = lambda j, i, k: (j, k)
            o_map = lambda j, i, k: (i, j)
        else:
            grid = (num_m, num_n, num_k)
            w_map = lambda i, j, k: (j, k)
            o_map = lambda i, j, k: (i, j)
        dim_sem = ("parallel", "parallel", "arbitrary")

    out = pl.pallas_call(
        kernel,
        out_shape=jax.ShapeDtypeStruct((M, V), jnp.float32),
        grid_spec=pltpu.PrefetchScalarGridSpec(
            num_scalar_prefetch=0,
            grid=grid,
            in_specs=[
                pl.BlockSpec(x_block, x_map),
                pl.BlockSpec(w_block, w_map),
            ],
            out_specs=pl.BlockSpec((tm_eff, tn_eff), o_map),
        ),
        compiler_params=pltpu.CompilerParams(
            dimension_semantics=dim_sem,
            vmem_limit_bytes=int(vmem_budget),
        ),
    )(x, w)

    return out.reshape(B, S, V)


if __name__ == "__main__":
    # Small shapes consistent with the module: dim=32, vocab=256, batch=2, seq=8.
    batch, seq, dim, vocab = 2, 8, 32, 256

    key = jax.random.PRNGKey(0)
    k_data, k_w, k_data2, k_w2 = jax.random.split(key, 4)

    # nn.Linear weight shape: (vocab, dim).
    data = jax.random.normal(k_data, (batch, seq, dim), dtype=jnp.bfloat16)
    weight = (jax.random.normal(k_w, (vocab, dim), dtype=jnp.float32) * 0.02).astype(
        jnp.bfloat16
    )

    out = jax.block_until_ready(output_layer_forward(data, weight))
    ref = jnp.einsum(
        "bsd,vd->bsv", data.astype(jnp.float32), weight.astype(jnp.float32)
    )
    assert out.shape == (batch, seq, vocab)
    assert out.dtype == jnp.float32
    assert jnp.allclose(out, ref, atol=1e-2, rtol=1e-2)

    # Second small check: exercises the K-reduction grid (num_k > 1), the
    # K-resident activation block, the swapped (vocab-leading) grid for a
    # single-M-tile call, and a vocab size that is not a tile multiple
    # (masked ragged output stores — no padding / slicing in the wrapper).
    dim2, vocab2 = 512, 384
    data2 = jax.random.normal(k_data2, (batch, seq, dim2), dtype=jnp.bfloat16)
    weight2 = (jax.random.normal(k_w2, (vocab2, dim2), dtype=jnp.float32) * 0.02).astype(
        jnp.bfloat16
    )
    out2 = jax.block_until_ready(
        output_layer_forward(data2, weight2, tm=128, tn=256, tk=128)
    )
    ref2 = jnp.einsum(
        "bsd,vd->bsv", data2.astype(jnp.float32), weight2.astype(jnp.float32)
    )
    assert out2.shape == (batch, seq, vocab2)
    assert out2.dtype == jnp.float32
    assert jnp.allclose(out2, ref2, atol=1e-2, rtol=1e-2)

    print("KERNEL_OK")
</pallas_src>

<mosaic_0001>
module attributes {stable_mosaic.version = 11 : i64} {
  func.func @_lm_head_kernel_single_k(%arg0: i32, %arg1: i32, %arg2: memref<16x32xbf16, #tpu.memory_space<vmem>>, %arg3: memref<256x32xbf16, #tpu.memory_space<vmem>>, %arg4: memref<16x256xf32, #tpu.memory_space<vmem>>) attributes {dimension_semantics = [#tpu.dimension_semantics<parallel>, #tpu.dimension_semantics<parallel>], iteration_bounds = array<i64: 1, 1>, scalar_prefetch = 0 : i64, scratch_operands = 0 : i64, tpu.core_type = #tpu.core_type<tc>, window_params = [{transform_indices = @transform_0, window_bounds = array<i64: 16, 32>}, {transform_indices = @transform_1, window_bounds = array<i64: 256, 32>}, {transform_indices = @transform_2, window_bounds = array<i64: 16, 256>}]} {
    %c0 = arith.constant 0 : index
    %c0_0 = arith.constant 0 : index
    %0 = vector.load %arg2[%c0, %c0_0] : memref<16x32xbf16, #tpu.memory_space<vmem>>, vector<16x32xbf16>
    %c0_1 = arith.constant 0 : index
    %c0_2 = arith.constant 0 : index
    %1 = vector.load %arg3[%c0_1, %c0_2] : memref<256x32xbf16, #tpu.memory_space<vmem>>, vector<256x32xbf16>
    %cst = arith.constant dense<0.000000e+00> : vector<16x256xf32>
    %2 = tpu.matmul %0, %1, %cst {dimension_numbers = #tpu.dot_dimension_numbers<[1], [1], [0], [0], [0, 0, 1, 0], [], []>} : vector<16x32xbf16>, vector<256x32xbf16>, vector<16x256xf32> -> vector<16x256xf32>
    %c0_3 = arith.constant 0 : index
    %c0_4 = arith.constant 0 : index
    %3 = vector.load %arg4[%c0_3, %c0_4] : memref<16x256xf32, #tpu.memory_space<vmem>>, vector<16x256xf32>
    tpu.vector_store %arg4[%c0_3, %c0_4], %2 {strides = array<i32>} : memref<16x256xf32, #tpu.memory_space<vmem>>, vector<16x256xf32>,
    return
  }
  func.func @transform_0(%arg0: i32, %arg1: i32) -> (i32, i32) {
    %c0_i32 = arith.constant 0 : i32
    %c0_i32_0 = arith.constant 0 : i32
    return %arg0, %c0_i32 : i32, i32
  }
  func.func @transform_1(%arg0: i32, %arg1: i32) -> (i32, i32) {
    %c0_i32 = arith.constant 0 : i32
    %c0_i32_0 = arith.constant 0 : i32
    return %arg1, %c0_i32 : i32, i32
  }
  func.func @transform_2(%arg0: i32, %arg1: i32) -> (i32, i32) {
    %c0_i32 = arith.constant 0 : i32
    return %arg0, %arg1 : i32, i32
  }
}

</mosaic_0001>

<llo_original>
// kernel: output_layer_forward.1
$region0: #{output_layer_forward.1}
  #allocation0 [shape = 'u32[]', space=smem, size = 0x4, offset = 0x4, fixed_abs, tag = 'smem constant byte address 0x4 - core index']
  #allocation1 [shape = 'u32[144,128]{1,0:T(1,128)}', space=vmem, size = 0x12000, scoped, tag = 'internal scratch']
  %s0 = inlined_call_operand.vmem [shape: bf16[16,32], index: 0, kind: input, shape index: {}]
  %s1 = inlined_call_operand.vmem [shape: bf16[256,32], index: 1, kind: input, shape index: {}]
  %s2 = inlined_call_operand.hbm [shape: f32[16,256], index: 2, kind: output, shape index: {}]
  %s3 = sld [smem:[#allocation0]]
  $region18: #{output_layer_forward.1} parent=0
    _
  %s5 = ssub.s32 1, %s3
  %s6 = scalar_select 0, %s5, %s3
  $region1: #{output_layer_forward.1} parent=0
    #allocation2 [shape = 'u8[16384]{0}', space=vmem, size = 0x4000, scoped, tag = 'output window, operand 0, single buffered']
    #allocation3 [shape = 's32[1]{0}', space=sflag, size = 0x4, scoped, tag = 'scoped memory for output_layer_forward.1']
    %7 = vsyncpa [#allocation3], 0
    // Predicated region
    $region2: #{output_layer_forward.1} parent=1 // pred_check
      _
    $region3: #{output_layer_forward.1} parent=1 // pred_check_branch
      %9 = sbr.rel (0) target = $region5
    $region4: #{output_layer_forward.1} parent=1 // pred_region
      _
    $region5: #{output_layer_forward.1} parent=1 // pred_fallthru
      _
    // Predicated region
    $region6: #{output_layer_forward.1} parent=1 // pred_check
      _
    $region7: #{output_layer_forward.1} parent=1 // pred_check_branch
      %11 = sbr.rel (0) target = $region9
    $region8: #{output_layer_forward.1} parent=1 // pred_region
      _
    $region9: #{output_layer_forward.1} parent=1 // pred_fallthru
      _
    %v13 = vld [vmem:[%s0] sm:$0xf]
    %v14 = vld [vmem:[%s0 + $0x4] sm:$0xf]
    %v15 = vld [vmem:[%s1] sm:$0xf]
    %v16 = vld [vmem:[%s1 + $0x4] sm:$0xf]
    %v17 = vld [vmem:[%s1 + $0x8] sm:$0xf]
    %v18 = vld [vmem:[%s1 + $0xc] sm:$0xf]
    %v19 = vld [vmem:[%s1 + $0x10] sm:$0xf]
    %v20 = vld [vmem:[%s1 + $0x14] sm:$0xf]
    %v21 = vld [vmem:[%s1 + $0x18] sm:$0xf]
    %v22 = vld [vmem:[%s1 + $0x1c] sm:$0xf]
    %v23 = vld [vmem:[%s1 + $0x20] sm:$0xf]
    %v24 = vld [vmem:[%s1 + $0x24] sm:$0xf]
    %v25 = vld [vmem:[%s1 + $0x28] sm:$0xf]
    %v26 = vld [vmem:[%s1 + $0x2c] sm:$0xf]
    %v27 = vld [vmem:[%s1 + $0x30] sm:$0xf]
    %v28 = vld [vmem:[%s1 + $0x34] sm:$0xf]
    %v29 = vld [vmem:[%s1 + $0x38] sm:$0xf]
    %v30 = vld [vmem:[%s1 + $0x3c] sm:$0xf]
    %v31 = vld [vmem:[%s1 + $0x40] sm:$0xf]
    %v32 = vld [vmem:[%s1 + $0x44] sm:$0xf]
    %v33 = vld [vmem:[%s1 + $0x48] sm:$0xf]
    %v34 = vld [vmem:[%s1 + $0x4c] sm:$0xf]
    %v35 = vld [vmem:[%s1 + $0x50] sm:$0xf]
    %v36 = vld [vmem:[%s1 + $0x54] sm:$0xf]
    %v37 = vld [vmem:[%s1 + $0x58] sm:$0xf]
    %v38 = vld [vmem:[%s1 + $0x5c] sm:$0xf]
    %v39 = vld [vmem:[%s1 + $0x60] sm:$0xf]
    %v40 = vld [vmem:[%s1 + $0x64] sm:$0xf]
    %v41 = vld [vmem:[%s1 + $0x68] sm:$0xf]
    %v42 = vld [vmem:[%s1 + $0x6c] sm:$0xf]
    %v43 = vld [vmem:[%s1 + $0x70] sm:$0xf]
    %v44 = vld [vmem:[%s1 + $0x74] sm:$0xf]
    %v45 = vld [vmem:[%s1 + $0x78] sm:$0xf]
    %v46 = vld [vmem:[%s1 + $0x7c] sm:$0xf]
    %v49 = vunpack.c.l.b16 %v13
    %v50 = vunpack.c.l.b16 %v14
    %v51 = vpack.c.b16 %v50, %v49
    %v84 = vunpack.c.l.b16 %v15
    %v85 = vunpack.c.l.b16 %v16
    %v86 = vunpack.c.l.b16 %v17
    %v87 = vunpack.c.l.b16 %v18
    %v88 = vunpack.c.l.b16 %v19
    %v89 = vunpack.c.l.b16 %v20
    %v90 = vunpack.c.l.b16 %v21
    %v91 = vunpack.c.l.b16 %v22
    %v92 = vunpack.c.l.b16 %v23
    %v93 = vunpack.c.l.b16 %v24
    %v94 = vunpack.c.l.b16 %v25
    %v95 = vunpack.c.l.b16 %v26
    %v96 = vunpack.c.l.b16 %v27
    %v97 = vunpack.c.l.b16 %v28
    %v98 = vunpack.c.l.b16 %v29
    %v99 = vunpack.c.l.b16 %v30
    %v100 = vunpack.c.l.b16 %v31
    %v101 = vunpack.c.l.b16 %v32
    %v102 = vunpack.c.l.b16 %v33
    %v103 = vunpack.c.l.b16 %v34
    %v104 = vunpack.c.l.b16 %v35
    %v105 = vunpack.c.l.b16 %v36
    %v106 = vunpack.c.l.b16 %v37
    %v107 = vunpack.c.l.b16 %v38
    %v108 = vunpack.c.l.b16 %v39
    %v109 = vunpack.c.l.b16 %v40
    %v110 = vunpack.c.l.b16 %v41
    %v111 = vunpack.c.l.b16 %v42
    %v112 = vunpack.c.l.b16 %v43
    %v113 = vunpack.c.l.b16 %v44
    %v114 = vunpack.c.l.b16 %v45
    %v115 = vunpack.c.l.b16 %v46
    %v116 = vpack.c.b16 %v85, %v84
    %v117 = vpack.c.b16 %v87, %v86
    %v118 = vpack.c.b16 %v89, %v88
    %v119 = vpack.c.b16 %v91, %v90
    %v120 = vpack.c.b16 %v93, %v92
    %v121 = vpack.c.b16 %v95, %v94
    %v122 = vpack.c.b16 %v97, %v96
    %v123 = vpack.c.b16 %v99, %v98
    %v124 = vpack.c.b16 %v101, %v100
    %v125 = vpack.c.b16 %v103, %v102
    %v126 = vpack.c.b16 %v105, %v104
    %v127 = vpack.c.b16 %v107, %v106
    %v128 = vpack.c.b16 %v109, %v108
    %v129 = vpack.c.b16 %v111, %v110
    %v130 = vpack.c.b16 %v113, %v112
    %v131 = vpack.c.b16 %v115, %v114
    %vm132 = vcmask 261120
    %v134 = vsel %vm132, %v51, 0
    %v137 = vsel %vm132, %v116, 0
    %v140 = vsel %vm132, %v117, 0
    %v143 = vsel %vm132, %v118, 0
    %v146 = vsel %vm132, %v119, 0
    %v149 = vsel %vm132, %v120, 0
    %v152 = vsel %vm132, %v121, 0
    %v155 = vsel %vm132, %v122, 0
    %v158 = vsel %vm132, %v123, 0
    %v161 = vsel %vm132, %v124, 0
    %v164 = vsel %vm132, %v125, 0
    %v167 = vsel %vm132, %v126, 0
    %v170 = vsel %vm132, %v127, 0
    %v173 = vsel %vm132, %v128, 0
    %v176 = vsel %vm132, %v129, 0
    %v179 = vsel %vm132, %v130, 0
    %v182 = vsel %vm132, %v131, 0
    %184 = vmatprep.subr.bf16.mxu0 0
    %185 = vmatpush1.bf16.xpose.msra.mxu0 %v137
    %186 = vmatprep.subr.bf16.mxu0 0
    %187 = vmatpush1.bf16.xpose.msra.mxu0 %v140
    %188 = vmatprep.subr.bf16.mxu0 0
    %189 = vmatpush1.bf16.xpose.msra.mxu0 %v143
    %190 = vmatprep.subr.bf16.mxu0 0
    %191 = vmatpush1.bf16.xpose.msra.mxu0 %v146
    %192 = vmatprep.subr.bf16.mxu0 0
    %193 = vmatpush1.bf16.xpose.msra.mxu0 %v149
    %194 = vmatprep.subr.bf16.mxu0 0
    %195 = vmatpush1.bf16.xpose.msra.mxu0 %v152
    %196 = vmatprep.subr.bf16.mxu0 0
    %197 = vmatpush1.bf16.xpose.msra.mxu0 %v155
    %198 = vmatprep.subr.bf16.mxu0 0
    %199 = vmatpush1.bf16.xpose.msra.mxu0 %v158
    %200 = vmatprep.subr.bf16.mxu0 0
    %201 = vmatpush1.bf16.xpose.msra.mxu0 %v161
    %202 = vmatprep.subr.bf16.mxu0 0
    %203 = vmatpush1.bf16.xpose.msra.mxu0 %v164
    %204 = vmatprep.subr.bf16.mxu0 0
    %205 = vmatpush1.bf16.xpose.msra.mxu0 %v167
    %206 = vmatprep.subr.bf16.mxu0 0
    %207 = vmatpush1.bf16.xpose.msra.mxu0 %v170
    %208 = vmatprep.subr.bf16.mxu0 0
    %209 = vmatpush1.bf16.xpose.msra.mxu0 %v173
    %210 = vmatprep.subr.bf16.mxu0 0
    %211 = vmatpush1.bf16.xpose.msra.mxu0 %v176
    %212 = vmatprep.subr.bf16.mxu0 0
    %213 = vmatpush1.bf16.xpose.msra.mxu0 %v179
    %214 = vmatprep.subr.bf16.mxu0 0
    %215 = vmatpush1.bf16.xpose.msra.mxu0 %v182
    %216 = vmatprep.mubr.bf16.mxu0 0
    %217 = vmatmul.mubr.bf16.gmra.mrb[0].mxu0 %v134
    %v218 = vpop.f32.mrb[0].mxu0
    %v219 = vadd.f32 0.0, %v218
    %v220 = vpop.f32.mrb[0].mxu0
    %v221 = vadd.f32 0.0, %v220
    %v222 = vpop.f32.mrb[0].mxu0
    %v223 = vadd.f32 0.0, %v222
    %v224 = vpop.f32.mrb[0].mxu0
    %v225 = vadd.f32 0.0, %v224
    %226 = vdwg.mxu0
    %227 = vst [vmem:[#allocation2] sm:$0xff] %v219
    %228 = vst [vmem:[#allocation2 + $0x8] sm:$0xff] %v221
    %229 = vst [vmem:[#allocation2 + $0x10] sm:$0xff] %v223
    %230 = vst [vmem:[#allocation2 + $0x18] sm:$0xff] %v225
    // Predicated region
    $region10: #{output_layer_forward.1} parent=1 // pred_check
      _
    $region11: #{output_layer_forward.1} parent=1 // pred_check_branch
      %232 = sbr.rel (0) target = $region13
    $region12: #{output_layer_forward.1} parent=1 // pred_region
      %s234 = ssub.s32 512, 512
      %235 = vsyncadd [#allocation3], %s234
      %s236 = sshll.u32 [#allocation2], 4
      %s237 = int_to_ptr.vmem [resolvable:$true] %s236
      %242 = dma.vmem_to_hbm [thread:$0]  %s237, 512, %s2, [#allocation3], 256, 256, 16
    $region13: #{output_layer_forward.1} parent=1 // pred_fallthru
      _
    // Predicated region
    $region14: #{output_layer_forward.1} parent=1 // pred_check
      _
    $region15: #{output_layer_forward.1} parent=1 // pred_check_branch
      %244 = sbr.rel (0) target = $region17
    $region16: #{output_layer_forward.1} parent=1 // pred_region
      %245 = dma.done [#allocation3], 512
    $region17: #{output_layer_forward.1} parent=1 // pred_fallthru
      _
    %246 = vsyncpa [#allocation3], 1

</llo_original>
